<compile_context>
chip_gen: v5e
topology: v5e:2x2
jax: 0.10.0
libtpu: 0.0.40
codegen_flags: <defaults>
</compile_context>

<pallas_src>
import functools

import jax
import jax.numpy as jnp
import numpy as np
from jax.experimental import pallas as pl
from jax.experimental.pallas import tpu as pltpu


HIDDEN = 200


def _round_up(n, m):
    return ((n + m - 1) // m) * m


def _mlp_kernel(x_ref, w1_ref, b1_ref, w2_ref, b2_ref, w3_ref, b3_ref, o_ref):
    # Hoist bias reads (single load each per grid step).
    b1 = b1_ref[...]
    b2 = b2_ref[...]
    b3 = b3_ref[...]

    # bf16 MXU operands, f32 accumulation, f32 tanh on the EUP.
    x = x_ref[...].astype(jnp.bfloat16)
    h1 = jnp.tanh(
        jnp.dot(x, w1_ref[...], preferred_element_type=jnp.float32) + b1
    )
    h2 = jnp.tanh(
        jnp.dot(h1.astype(jnp.bfloat16), w2_ref[...],
                preferred_element_type=jnp.float32) + b2
    )
    out = jnp.dot(h2.astype(jnp.bfloat16), w3_ref[...],
                  preferred_element_type=jnp.float32) + b3
    o_ref[...] = out.astype(o_ref.dtype)


@functools.partial(jax.jit, static_argnames=("block_b",))
def nn_forward(x, params, *, block_b=256):
    """Pallas forward pass of the NN module.

    x: (batch, input_size) float32
    params: dict with w1 (in,200), b1 (1,200), w2 (200,200), b2 (1,200),
            w3 (200,out), b3 (1,out)  -- all float32 (PyTorch layout, W transposed)
    """
    w1, b1 = params["w1"], params["b1"]
    w2, b2 = params["w2"], params["b2"]
    w3, b3 = params["w3"], params["b3"]

    batch, in_size = x.shape
    hid = w1.shape[1]
    out_size = w3.shape[1]

    hid_pad = _round_up(hid, 128)                     # 200 -> 256
    out_pad = _round_up(max(out_size, 128), 128)      # lane-dense output

    # Batch tiling: single tile for small batches, block_b-row tiles otherwise.
    if batch <= block_b:
        tile_b = _round_up(batch, 8)
        batch_pad = tile_b
    else:
        tile_b = block_b
        batch_pad = _round_up(batch, tile_b)

    # Pad operands (zeros) and cast weights to bf16 for the MXU.
    x_p = jnp.pad(x, ((0, batch_pad - batch), (0, 0)))
    w1_p = jnp.pad(w1, ((0, 0), (0, hid_pad - hid))).astype(jnp.bfloat16)
    b1_p = jnp.pad(b1, ((0, 0), (0, hid_pad - hid)))
    w2_p = jnp.pad(w2, ((0, hid_pad - hid), (0, hid_pad - hid))).astype(jnp.bfloat16)
    b2_p = jnp.pad(b2, ((0, 0), (0, hid_pad - hid)))
    w3_p = jnp.pad(w3, ((0, hid_pad - hid), (0, out_pad - out_size))).astype(jnp.bfloat16)
    b3_p = jnp.pad(b3, ((0, 0), (0, out_pad - out_size)))

    grid = (batch_pad // tile_b,)

    out_padded = pl.pallas_call(
        _mlp_kernel,
        out_shape=jax.ShapeDtypeStruct((batch_pad, out_pad), jnp.float32),
        grid=grid,
        in_specs=[
            pl.BlockSpec((tile_b, in_size), lambda i: (i, 0)),   # x: batch tiles
            pl.BlockSpec((in_size, hid_pad), lambda i: (0, 0)),  # w1 resident
            pl.BlockSpec((1, hid_pad), lambda i: (0, 0)),        # b1 resident
            pl.BlockSpec((hid_pad, hid_pad), lambda i: (0, 0)),  # w2 resident
            pl.BlockSpec((1, hid_pad), lambda i: (0, 0)),        # b2 resident
            pl.BlockSpec((hid_pad, out_pad), lambda i: (0, 0)),  # w3 resident
            pl.BlockSpec((1, out_pad), lambda i: (0, 0)),        # b3 resident
        ],
        out_specs=pl.BlockSpec((tile_b, out_pad), lambda i: (i, 0)),
        compiler_params=pltpu.CompilerParams(
            dimension_semantics=("parallel",),
        ),
    )(x_p, w1_p, b1_p, w2_p, b2_p, w3_p, b3_p)

    return out_padded[:batch, :out_size]


def init_params(key, input_size, output_size):
    """Deterministic init mimicking PyTorch's Linear default:
    U(-1/sqrt(fan_in), 1/sqrt(fan_in)) for weights and biases."""
    ks = jax.random.split(key, 6)

    def lin(kw, kb, fan_in, fan_out):
        bound = 1.0 / np.sqrt(fan_in)
        w = jax.random.uniform(
            kw, (fan_in, fan_out), jnp.float32, minval=-bound, maxval=bound
        )
        b = jax.random.uniform(
            kb, (1, fan_out), jnp.float32, minval=-bound, maxval=bound
        )
        return w, b

    w1, b1 = lin(ks[0], ks[1], input_size, HIDDEN)
    w2, b2 = lin(ks[2], ks[3], HIDDEN, HIDDEN)
    w3, b3 = lin(ks[4], ks[5], HIDDEN, output_size)
    return {"w1": w1, "b1": b1, "w2": w2, "b2": b2, "w3": w3, "b3": b3}


def nn_forward_ref(x, p):
    """Reference with the same bf16-operand / f32-accumulate numerics."""
    bf = jnp.bfloat16
    h1 = jnp.tanh(
        jnp.dot(x.astype(bf), p["w1"].astype(bf),
                preferred_element_type=jnp.float32) + p["b1"]
    )
    h2 = jnp.tanh(
        jnp.dot(h1.astype(bf), p["w2"].astype(bf),
                preferred_element_type=jnp.float32) + p["b2"]
    )
    return jnp.dot(h2.astype(bf), p["w3"].astype(bf),
                   preferred_element_type=jnp.float32) + p["b3"]


if __name__ == "__main__":
    # Small DQN-style shapes (e.g. CartPole): state dim 4, 2 actions, batch 8.
    batch, input_size, output_size = 8, 4, 2

    key = jax.random.PRNGKey(0)
    k_params, k_x = jax.random.split(key)
    params = init_params(k_params, input_size, output_size)
    x = jax.random.normal(k_x, (batch, input_size), jnp.float32)

    out = jax.block_until_ready(nn_forward(x, params))
    ref = jax.block_until_ready(nn_forward_ref(x, params))
    np.testing.assert_allclose(np.asarray(out), np.asarray(ref),
                               rtol=2e-2, atol=2e-2)
    assert out.shape == (batch, output_size)

    # Exercise the multi-step batch grid + tail padding path.
    batch2 = 260
    x2 = jax.random.normal(jax.random.PRNGKey(1), (batch2, input_size), jnp.float32)
    out2 = jax.block_until_ready(nn_forward(x2, params, block_b=128))
    ref2 = jax.block_until_ready(nn_forward_ref(x2, params))
    np.testing.assert_allclose(np.asarray(out2), np.asarray(ref2),
                               rtol=2e-2, atol=2e-2)
    assert out2.shape == (batch2, output_size)

    print("KERNEL_OK")
</pallas_src>

<mosaic_0001>
module attributes {stable_mosaic.version = 11 : i64} {
  func.func @_mlp_kernel(%arg0: i32, %arg1: memref<8x4xf32, #tpu.memory_space<vmem>>, %arg2: memref<4x256xbf16, #tpu.memory_space<vmem>>, %arg3: memref<1x256xf32, #tpu.memory_space<vmem>>, %arg4: memref<256x256xbf16, #tpu.memory_space<vmem>>, %arg5: memref<1x256xf32, #tpu.memory_space<vmem>>, %arg6: memref<256x128xbf16, #tpu.memory_space<vmem>>, %arg7: memref<1x128xf32, #tpu.memory_space<vmem>>, %arg8: memref<8x128xf32, #tpu.memory_space<vmem>>) attributes {dimension_semantics = [#tpu.dimension_semantics<parallel>], iteration_bounds = array<i64: 1>, scalar_prefetch = 0 : i64, scratch_operands = 0 : i64, tpu.core_type = #tpu.core_type<tc>, window_params = [{transform_indices = @transform_0, window_bounds = array<i64: 8, 4>}, {pipeline_mode = #tpu.pipeline_mode<synchronous>, transform_indices = @transform_1, window_bounds = array<i64: 4, 256>}, {pipeline_mode = #tpu.pipeline_mode<synchronous>, transform_indices = @transform_2, window_bounds = array<i64: 1, 256>}, {pipeline_mode = #tpu.pipeline_mode<synchronous>, transform_indices = @transform_3, window_bounds = array<i64: 256, 256>}, {pipeline_mode = #tpu.pipeline_mode<synchronous>, transform_indices = @transform_4, window_bounds = array<i64: 1, 256>}, {pipeline_mode = #tpu.pipeline_mode<synchronous>, transform_indices = @transform_5, window_bounds = array<i64: 256, 128>}, {pipeline_mode = #tpu.pipeline_mode<synchronous>, transform_indices = @transform_6, window_bounds = array<i64: 1, 128>}, {transform_indices = @transform_7, window_bounds = array<i64: 8, 128>}]} {
    %c0 = arith.constant 0 : index
    %c0_0 = arith.constant 0 : index
    %0 = vector.load %arg3[%c0, %c0_0] : memref<1x256xf32, #tpu.memory_space<vmem>>, vector<1x256xf32>
    %c0_1 = arith.constant 0 : index
    %c0_2 = arith.constant 0 : index
    %1 = vector.load %arg5[%c0_1, %c0_2] : memref<1x256xf32, #tpu.memory_space<vmem>>, vector<1x256xf32>
    %c0_3 = arith.constant 0 : index
    %c0_4 = arith.constant 0 : index
    %2 = vector.load %arg7[%c0_3, %c0_4] : memref<1x128xf32, #tpu.memory_space<vmem>>, vector<1x128xf32>
    %c0_5 = arith.constant 0 : index
    %c0_6 = arith.constant 0 : index
    %3 = vector.load %arg1[%c0_5, %c0_6] : memref<8x4xf32, #tpu.memory_space<vmem>>, vector<8x4xf32>
    %4 = arith.truncf %3 : vector<8x4xf32> to vector<8x4xbf16>
    %c0_7 = arith.constant 0 : index
    %c0_8 = arith.constant 0 : index
    %5 = vector.load %arg2[%c0_7, %c0_8] : memref<4x256xbf16, #tpu.memory_space<vmem>>, vector<4x256xbf16>
    %cst = arith.constant dense<0.000000e+00> : vector<8x256xf32>
    %6 = tpu.matmul %4, %5, %cst {dimension_numbers = #tpu.dot_dimension_numbers<[1], [0], [0], [1], [0, 0, 1, 1], [], []>} : vector<8x4xbf16>, vector<4x256xbf16>, vector<8x256xf32> -> vector<8x256xf32>
    %7 = vector.broadcast %0 : vector<1x256xf32> to vector<8x256xf32>
    %8 = arith.addf %6, %7 : vector<8x256xf32>
    %9 = math.tanh %8 : vector<8x256xf32>
    %10 = arith.truncf %9 : vector<8x256xf32> to vector<8x256xbf16>
    %c0_9 = arith.constant 0 : index
    %c0_10 = arith.constant 0 : index
    %11 = vector.load %arg4[%c0_9, %c0_10] : memref<256x256xbf16, #tpu.memory_space<vmem>>, vector<256x256xbf16>
    %cst_11 = arith.constant dense<0.000000e+00> : vector<8x256xf32>
    %12 = tpu.matmul %10, %11, %cst_11 {dimension_numbers = #tpu.dot_dimension_numbers<[1], [0], [0], [1], [0, 0, 1, 1], [], []>} : vector<8x256xbf16>, vector<256x256xbf16>, vector<8x256xf32> -> vector<8x256xf32>
    %13 = vector.broadcast %1 : vector<1x256xf32> to vector<8x256xf32>
    %14 = arith.addf %12, %13 : vector<8x256xf32>
    %15 = math.tanh %14 : vector<8x256xf32>
    %16 = arith.truncf %15 : vector<8x256xf32> to vector<8x256xbf16>
    %c0_12 = arith.constant 0 : index
    %c0_13 = arith.constant 0 : index
    %17 = vector.load %arg6[%c0_12, %c0_13] : memref<256x128xbf16, #tpu.memory_space<vmem>>, vector<256x128xbf16>
    %cst_14 = arith.constant dense<0.000000e+00> : vector<8x128xf32>
    %18 = tpu.matmul %16, %17, %cst_14 {dimension_numbers = #tpu.dot_dimension_numbers<[1], [0], [0], [1], [0, 0, 1, 1], [], []>} : vector<8x256xbf16>, vector<256x128xbf16>, vector<8x128xf32> -> vector<8x128xf32>
    %19 = vector.broadcast %2 : vector<1x128xf32> to vector<8x128xf32>
    %20 = arith.addf %18, %19 : vector<8x128xf32>
    %c0_15 = arith.constant 0 : index
    %c0_16 = arith.constant 0 : index
    %21 = vector.load %arg8[%c0_15, %c0_16] : memref<8x128xf32, #tpu.memory_space<vmem>>, vector<8x128xf32>
    tpu.vector_store %arg8[%c0_15, %c0_16], %20 {strides = array<i32>} : memref<8x128xf32, #tpu.memory_space<vmem>>, vector<8x128xf32>,
    return
  }
  func.func @transform_0(%arg0: i32) -> (i32, i32) {
    %c0_i32 = arith.constant 0 : i32
    %c0_i32_0 = arith.constant 0 : i32
    return %arg0, %c0_i32 : i32, i32
  }
  func.func @transform_1(%arg0: i32) -> (i32, i32) {
    %c0_i32 = arith.constant 0 : i32
    %c0_i32_0 = arith.constant 0 : i32
    %c0_i32_1 = arith.constant 0 : i32
    return %c0_i32, %c0_i32_0 : i32, i32
  }
  func.func @transform_2(%arg0: i32) -> (i32, i32) {
    %c0_i32 = arith.constant 0 : i32
    %c0_i32_0 = arith.constant 0 : i32
    %c0_i32_1 = arith.constant 0 : i32
    return %c0_i32, %c0_i32_0 : i32, i32
  }
  func.func @transform_3(%arg0: i32) -> (i32, i32) {
    %c0_i32 = arith.constant 0 : i32
    %c0_i32_0 = arith.constant 0 : i32
    %c0_i32_1 = arith.constant 0 : i32
    return %c0_i32, %c0_i32_0 : i32, i32
  }
  func.func @transform_4(%arg0: i32) -> (i32, i32) {
    %c0_i32 = arith.constant 0 : i32
    %c0_i32_0 = arith.constant 0 : i32
    %c0_i32_1 = arith.constant 0 : i32
    return %c0_i32, %c0_i32_0 : i32, i32
  }
  func.func @transform_5(%arg0: i32) -> (i32, i32) {
    %c0_i32 = arith.constant 0 : i32
    %c0_i32_0 = arith.constant 0 : i32
    %c0_i32_1 = arith.constant 0 : i32
    return %c0_i32, %c0_i32_0 : i32, i32
  }
  func.func @transform_6(%arg0: i32) -> (i32, i32) {
    %c0_i32 = arith.constant 0 : i32
    %c0_i32_0 = arith.constant 0 : i32
    %c0_i32_1 = arith.constant 0 : i32
    return %c0_i32, %c0_i32_0 : i32, i32
  }
  func.func @transform_7(%arg0: i32) -> (i32, i32) {
    %c0_i32 = arith.constant 0 : i32
    %c0_i32_0 = arith.constant 0 : i32
    return %arg0, %c0_i32 : i32, i32
  }
}

</mosaic_0001>

<llo_original>
// kernel: nn_forward.1
$region0: #{nn_forward.1}
  #allocation0 [shape = 'u32[]', space=smem, size = 0x4, offset = 0x4, fixed_abs, tag = 'smem constant byte address 0x4 - core index']
  #allocation1 [shape = 'u32[72,128]{1,0:T(1,128)}', space=vmem, size = 0x9000, scoped, tag = 'internal scratch']
  %s0 = inlined_call_operand.vmem [shape: f32[8,4], index: 0, kind: input, shape index: {}]
  %s1 = inlined_call_operand.vmem [shape: bf16[4,256], index: 1, kind: input, shape index: {}]
  %s2 = inlined_call_operand.vmem [shape: f32[1,256], index: 2, kind: input, shape index: {}]
  %s3 = inlined_call_operand.vmem [shape: bf16[256,256], index: 3, kind: input, shape index: {}]
  %s4 = inlined_call_operand.vmem [shape: f32[1,256], index: 4, kind: input, shape index: {}]
  %s5 = inlined_call_operand.vmem [shape: bf16[256,128], index: 5, kind: input, shape index: {}]
  %s6 = inlined_call_operand.vmem [shape: f32[1,128], index: 6, kind: input, shape index: {}]
  %s7 = inlined_call_operand.vmem [shape: f32[8,128], index: 7, kind: output, shape index: {}]
  %s8 = sld [smem:[#allocation0]]
  $region38: #{nn_forward.1} parent=0
    _
  %s10 = ssub.s32 1, %s8
  %s11 = scalar_select 0, %s10, %s8
  // Predicated region
  $region2: #{nn_forward.1} parent=0 // pred_check
    _
  $region3: #{nn_forward.1} parent=0 // pred_check_branch
    %13 = sbr.rel (0) target = $region5
  $region4: #{nn_forward.1} parent=0 // pred_region
    _
  $region5: #{nn_forward.1} parent=0 // pred_fallthru
    _
  // Predicated region
  $region6: #{nn_forward.1} parent=0 // pred_check
    _
  $region7: #{nn_forward.1} parent=0 // pred_check_branch
    %15 = sbr.rel (0) target = $region9
  $region8: #{nn_forward.1} parent=0 // pred_region
    _
  $region9: #{nn_forward.1} parent=0 // pred_fallthru
    _
  // Predicated region
  $region10: #{nn_forward.1} parent=0 // pred_check
    _
  $region11: #{nn_forward.1} parent=0 // pred_check_branch
    %17 = sbr.rel (0) target = $region13
  $region12: #{nn_forward.1} parent=0 // pred_region
    _
  $region13: #{nn_forward.1} parent=0 // pred_fallthru
    _
  // Predicated region
  $region14: #{nn_forward.1} parent=0 // pred_check
    _
  $region15: #{nn_forward.1} parent=0 // pred_check_branch
    %19 = sbr.rel (0) target = $region17
  $region16: #{nn_forward.1} parent=0 // pred_region
    _
  $region17: #{nn_forward.1} parent=0 // pred_fallthru
    _
  // Predicated region
  $region18: #{nn_forward.1} parent=0 // pred_check
    _
  $region19: #{nn_forward.1} parent=0 // pred_check_branch
    %21 = sbr.rel (0) target = $region21
  $region20: #{nn_forward.1} parent=0 // pred_region
    _
  $region21: #{nn_forward.1} parent=0 // pred_fallthru
    _
  // Predicated region
  $region22: #{nn_forward.1} parent=0 // pred_check
    _
  $region23: #{nn_forward.1} parent=0 // pred_check_branch
    %23 = sbr.rel (0) target = $region25
  $region24: #{nn_forward.1} parent=0 // pred_region
    _
  $region25: #{nn_forward.1} parent=0 // pred_fallthru
    _
  // Predicated region
  $region26: #{nn_forward.1} parent=0 // pred_check
    _
  $region27: #{nn_forward.1} parent=0 // pred_check_branch
    %25 = sbr.rel (0) target = $region29
  $region28: #{nn_forward.1} parent=0 // pred_region
    _
  $region29: #{nn_forward.1} parent=0 // pred_fallthru
    _
  %v27 = vld [vmem:[%s2] sm:$0x3]
  %v28 = vld [vmem:[%s4] sm:$0x3]
  %v29 = vld [vmem:[%s6] sm:$0x1]
  %v30 = vld [vmem:[%s0] sm:$0xff]
  %v31 = vpack.c.bf16 %v30, %v30
  %v32 = vld [vmem:[%s1] sm:$0xf]
  %v34 = vperm.slane %v27, 0
  %v35 = vperm.slane %v27, 1
  %39 = vst [vmem:[#allocation1] ss:$4 sm:$0xff] %v32
  %v40 = vld.sshfl [vmem:[#allocation1] sm:$0xff pattern:$0x73625140]
  %v41 = vld.sshfl [vmem:[#allocation1 + $0x8] sm:$0xff pattern:$0x73625140]
  %vm42 = vcmask 31744
  %v44 = vsel %vm42, %v31, 0
  %vm46 = vcmask 1041408
  %v47 = vsel %vm46, %v40, 0
  %v49 = vsel %vm46, %v41, 0
  %51 = vmatpush.bf16.msra.mxu0 0
  %52 = vmatpush.bf16.msra.mxu0 0
  %53 = vmatpush.bf16.msra.mxu0 0
  %54 = vmatpush.bf16.msra.mxu0 0
  %55 = vmatpush.bf16.msra.mxu0 0
  %56 = vmatpush.bf16.msra.mxu0 0
  %57 = vmatpush.bf16.msra.mxu0 0
  %58 = vmatpush.bf16.msra.mxu0 %v47
  %59 = vmatmul.bf16.gmra.mxu0 %v44
  %v60 = vpop.f32.mrf.mxu0
  %v61 = vadd.f32 %v34, %v60
  %v62 = vpop.f32.mrf.mxu0
  %63 = vdwg.mxu0
  %64 = vmatpush.bf16.msra.mxu0 0
  %65 = vmatpush.bf16.msra.mxu0 0
  %66 = vmatpush.bf16.msra.mxu0 0
  %67 = vmatpush.bf16.msra.mxu0 0
  %68 = vmatpush.bf16.msra.mxu0 0
  %69 = vmatpush.bf16.msra.mxu0 0
  %70 = vmatpush.bf16.msra.mxu0 0
  %71 = vmatpush.bf16.msra.mxu0 %v49
  %72 = vmatmul.bf16.gmra.mxu0 %v44
  %v73 = vpop.f32.mrf.mxu0
  %v74 = vadd.f32 %v35, %v73
  %v75 = vpop.f32.mrf.mxu0
  %76 = vdwg.mxu0
  %v77 = vtanh.pop %v61
  %v78 = vtanh.pop %v74
  %v79 = vpack.c.bf16 %v77, %v77
  %v80 = vpack.c.bf16 %v78, %v78
  %v81 = vld [vmem:[%s3] sm:$0xff]
  %v82 = vld [vmem:[%s3 + $0x8] sm:$0xff]
  %v83 = vld [vmem:[%s3 + $0x10] sm:$0xff]
  %v84 = vld [vmem:[%s3 + $0x18] sm:$0xff]
  %v85 = vld [vmem:[%s3 + $0x20] sm:$0xff]
  %v86 = vld [vmem:[%s3 + $0x28] sm:$0xff]
  %v87 = vld [vmem:[%s3 + $0x30] sm:$0xff]
  %v88 = vld [vmem:[%s3 + $0x38] sm:$0xff]
  %v89 = vld [vmem:[%s3 + $0x40] sm:$0xff]
  %v90 = vld [vmem:[%s3 + $0x48] sm:$0xff]
  %v91 = vld [vmem:[%s3 + $0x50] sm:$0xff]
  %v92 = vld [vmem:[%s3 + $0x58] sm:$0xff]
  %v93 = vld [vmem:[%s3 + $0x60] sm:$0xff]
  %v94 = vld [vmem:[%s3 + $0x68] sm:$0xff]
  %v95 = vld [vmem:[%s3 + $0x70] sm:$0xff]
  %v96 = vld [vmem:[%s3 + $0x78] sm:$0xff]
  %v97 = vld [vmem:[%s3 + $0x80] sm:$0xff]
  %v98 = vld [vmem:[%s3 + $0x88] sm:$0xff]
  %v99 = vld [vmem:[%s3 + $0x90] sm:$0xff]
  %v100 = vld [vmem:[%s3 + $0x98] sm:$0xff]
  %v101 = vld [vmem:[%s3 + $0xa0] sm:$0xff]
  %v102 = vld [vmem:[%s3 + $0xa8] sm:$0xff]
  %v103 = vld [vmem:[%s3 + $0xb0] sm:$0xff]
  %v104 = vld [vmem:[%s3 + $0xb8] sm:$0xff]
  %v105 = vld [vmem:[%s3 + $0xc0] sm:$0xff]
  %v106 = vld [vmem:[%s3 + $0xc8] sm:$0xff]
  %v107 = vld [vmem:[%s3 + $0xd0] sm:$0xff]
  %v108 = vld [vmem:[%s3 + $0xd8] sm:$0xff]
  %v109 = vld [vmem:[%s3 + $0xe0] sm:$0xff]
  %v110 = vld [vmem:[%s3 + $0xe8] sm:$0xff]
  %v111 = vld [vmem:[%s3 + $0xf0] sm:$0xff]
  %v112 = vld [vmem:[%s3 + $0xf8] sm:$0xff]
  %v114 = vperm.slane %v28, 0
  %v115 = vperm.slane %v28, 1
  %v150 = vunpack.c.l.b16 %v81
  %v151 = vunpack.c.h.b16 %v81
  %v152 = vunpack.c.l.b16 %v82
  %v153 = vunpack.c.h.b16 %v82
  %v154 = vunpack.c.l.b16 %v83
  %v155 = vunpack.c.h.b16 %v83
  %v156 = vunpack.c.l.b16 %v84
  %v157 = vunpack.c.h.b16 %v84
  %v158 = vunpack.c.l.b16 %v85
  %v159 = vunpack.c.h.b16 %v85
  %v160 = vunpack.c.l.b16 %v86
  %v161 = vunpack.c.h.b16 %v86
  %v162 = vunpack.c.l.b16 %v87
  %v163 = vunpack.c.h.b16 %v87
  %v164 = vunpack.c.l.b16 %v88
  %v165 = vunpack.c.h.b16 %v88
  %v166 = vunpack.c.l.b16 %v89
  %v167 = vunpack.c.h.b16 %v89
  %v168 = vunpack.c.l.b16 %v90
  %v169 = vunpack.c.h.b16 %v90
  %v170 = vunpack.c.l.b16 %v91
  %v171 = vunpack.c.h.b16 %v91
  %v172 = vunpack.c.l.b16 %v92
  %v173 = vunpack.c.h.b16 %v92
  %v174 = vunpack.c.l.b16 %v93
  %v175 = vunpack.c.h.b16 %v93
  %v176 = vunpack.c.l.b16 %v94
  %v177 = vunpack.c.h.b16 %v94
  %v178 = vunpack.c.l.b16 %v95
  %v179 = vunpack.c.h.b16 %v95
  %v180 = vunpack.c.l.b16 %v96
  %v181 = vunpack.c.h.b16 %v96
  %v182 = vunpack.c.l.b16 %v97
  %v183 = vunpack.c.h.b16 %v97
  %v184 = vunpack.c.l.b16 %v98
  %v185 = vunpack.c.h.b16 %v98
  %v186 = vunpack.c.l.b16 %v99
  %v187 = vunpack.c.h.b16 %v99
  %v188 = vunpack.c.l.b16 %v100
  %v189 = vunpack.c.h.b16 %v100
  %v190 = vunpack.c.l.b16 %v101
  %v191 = vunpack.c.h.b16 %v101
  %v192 = vunpack.c.l.b16 %v102
  %v193 = vunpack.c.h.b16 %v102
  %v194 = vunpack.c.l.b16 %v103
  %v195 = vunpack.c.h.b16 %v103
  %v196 = vunpack.c.l.b16 %v104
  %v197 = vunpack.c.h.b16 %v104
  %v198 = vunpack.c.l.b16 %v105
  %v199 = vunpack.c.h.b16 %v105
  %v200 = vunpack.c.l.b16 %v106
  %v201 = vunpack.c.h.b16 %v106
  %v202 = vunpack.c.l.b16 %v107
  %v203 = vunpack.c.h.b16 %v107
  %v204 = vunpack.c.l.b16 %v108
  %v205 = vunpack.c.h.b16 %v108
  %v206 = vunpack.c.l.b16 %v109
  %v207 = vunpack.c.h.b16 %v109
  %v208 = vunpack.c.l.b16 %v110
  %v209 = vunpack.c.h.b16 %v110
  %v210 = vunpack.c.l.b16 %v111
  %v211 = vunpack.c.h.b16 %v111
  %v212 = vunpack.c.l.b16 %v112
  %v213 = vunpack.c.h.b16 %v112
  %v214 = vpack.c.b16 %v152, %v150
  %v215 = vpack.c.b16 %v153, %v151
  %v216 = vpack.c.b16 %v156, %v154
  %v217 = vpack.c.b16 %v157, %v155
  %v218 = vpack.c.b16 %v160, %v158
  %v219 = vpack.c.b16 %v161, %v159
  %v220 = vpack.c.b16 %v164, %v162
  %v221 = vpack.c.b16 %v165, %v163
  %v222 = vpack.c.b16 %v168, %v166
  %v223 = vpack.c.b16 %v169, %v167
  %v224 = vpack.c.b16 %v172, %v170
  %v225 = vpack.c.b16 %v173, %v171
  %v226 = vpack.c.b16 %v176, %v174
  %v227 = vpack.c.b16 %v177, %v175
  %v228 = vpack.c.b16 %v180, %v178
  %v229 = vpack.c.b16 %v181, %v179
  %v230 = vpack.c.b16 %v184, %v182
  %v231 = vpack.c.b16 %v185, %v183
  %v232 = vpack.c.b16 %v188, %v186
  %v233 = vpack.c.b16 %v189, %v187
  %v234 = vpack.c.b16 %v192, %v190
  %v235 = vpack.c.b16 %v193, %v191
  %v236 = vpack.c.b16 %v196, %v194
  %v237 = vpack.c.b16 %v197, %v195
  %v238 = vpack.c.b16 %v200, %v198
  %v239 = vpack.c.b16 %v201, %v199
  %v240 = vpack.c.b16 %v204, %v202
  %v241 = vpack.c.b16 %v205, %v203
  %v242 = vpack.c.b16 %v208, %v206
  %v243 = vpack.c.b16 %v209, %v207
  %v244 = vpack.c.b16 %v212, %v210
  %v245 = vpack.c.b16 %v213, %v211
  %278 = vmatpush.bf16.msra.mxu0 %v228
  %279 = vmatpush.bf16.msra.mxu0 %v226
  %280 = vmatpush.bf16.msra.mxu0 %v224
  %281 = vmatpush.bf16.msra.mxu0 %v222
  %282 = vmatpush.bf16.msra.mxu0 %v220
  %283 = vmatpush.bf16.msra.mxu0 %v218
  %284 = vmatpush.bf16.msra.mxu0 %v216
  %285 = vmatpush.bf16.msra.mxu0 %v214
  %286 = vmatmul.bf16.gmra.mxu0 %v79
  %v287 = vpop.f32.mrf.mxu0
  %v288 = vadd.f32 %v114, %v287
  %v289 = vpop.f32.mrf.mxu0
  %290 = vdwg.mxu0
  %291 = vmatpush.bf16.msra.mxu0 %v244
  %292 = vmatpush.bf16.msra.mxu0 %v242
  %293 = vmatpush.bf16.msra.mxu0 %v240
  %294 = vmatpush.bf16.msra.mxu0 %v238
  %295 = vmatpush.bf16.msra.mxu0 %v236
  %296 = vmatpush.bf16.msra.mxu0 %v234
  %297 = vmatpush.bf16.msra.mxu0 %v232
  %298 = vmatpush.bf16.msra.mxu0 %v230
  %299 = vmatmul.bf16.gmra.mxu0 %v80
  %v300 = vpop.f32.mrf.mxu0
  %v301 = vadd.f32 %v288, %v300
  %v302 = vpop.f32.mrf.mxu0
  %303 = vdwg.mxu0
  %304 = vmatpush.bf16.msra.mxu0 %v229
  %305 = vmatpush.bf16.msra.mxu0 %v227
  %306 = vmatpush.bf16.msra.mxu0 %v225
  %307 = vmatpush.bf16.msra.mxu0 %v223
  %308 = vmatpush.bf16.msra.mxu0 %v221
  %309 = vmatpush.bf16.msra.mxu0 %v219
  %310 = vmatpush.bf16.msra.mxu0 %v217
  %311 = vmatpush.bf16.msra.mxu0 %v215
  %312 = vmatmul.bf16.gmra.mxu0 %v79
  %v313 = vpop.f32.mrf.mxu0
  %v314 = vadd.f32 %v115, %v313
  %v315 = vpop.f32.mrf.mxu0
  %316 = vdwg.mxu0
  %317 = vmatpush.bf16.msra.mxu0 %v245
  %318 = vmatpush.bf16.msra.mxu0 %v243
  %319 = vmatpush.bf16.msra.mxu0 %v241
  %320 = vmatpush.bf16.msra.mxu0 %v239
  %321 = vmatpush.bf16.msra.mxu0 %v237
  %322 = vmatpush.bf16.msra.mxu0 %v235
  %323 = vmatpush.bf16.msra.mxu0 %v233
  %324 = vmatpush.bf16.msra.mxu0 %v231
  %325 = vmatmul.bf16.gmra.mxu0 %v80
  %v326 = vpop.f32.mrf.mxu0
  %v327 = vadd.f32 %v314, %v326
  %v328 = vpop.f32.mrf.mxu0
  %329 = vdwg.mxu0
  %v330 = vtanh.pop %v301
  %v331 = vtanh.pop %v327
  %v332 = vpack.c.bf16 %v330, %v330
  %v333 = vpack.c.bf16 %v331, %v331
  %v334 = vld [vmem:[%s5] sm:$0xf]
  %v335 = vld [vmem:[%s5 + $0x4] sm:$0xf]
  %v336 = vld [vmem:[%s5 + $0x8] sm:$0xf]
  %v337 = vld [vmem:[%s5 + $0xc] sm:$0xf]
  %v338 = vld [vmem:[%s5 + $0x10] sm:$0xf]
  %v339 = vld [vmem:[%s5 + $0x14] sm:$0xf]
  %v340 = vld [vmem:[%s5 + $0x18] sm:$0xf]
  %v341 = vld [vmem:[%s5 + $0x1c] sm:$0xf]
  %v342 = vld [vmem:[%s5 + $0x20] sm:$0xf]
  %v343 = vld [vmem:[%s5 + $0x24] sm:$0xf]
  %v344 = vld [vmem:[%s5 + $0x28] sm:$0xf]
  %v345 = vld [vmem:[%s5 + $0x2c] sm:$0xf]
  %v346 = vld [vmem:[%s5 + $0x30] sm:$0xf]
  %v347 = vld [vmem:[%s5 + $0x34] sm:$0xf]
  %v348 = vld [vmem:[%s5 + $0x38] sm:$0xf]
  %v349 = vld [vmem:[%s5 + $0x3c] sm:$0xf]
  %v350 = vld [vmem:[%s5 + $0x40] sm:$0xf]
  %v351 = vld [vmem:[%s5 + $0x44] sm:$0xf]
  %v352 = vld [vmem:[%s5 + $0x48] sm:$0xf]
  %v353 = vld [vmem:[%s5 + $0x4c] sm:$0xf]
  %v354 = vld [vmem:[%s5 + $0x50] sm:$0xf]
  %v355 = vld [vmem:[%s5 + $0x54] sm:$0xf]
  %v356 = vld [vmem:[%s5 + $0x58] sm:$0xf]
  %v357 = vld [vmem:[%s5 + $0x5c] sm:$0xf]
  %v358 = vld [vmem:[%s5 + $0x60] sm:$0xf]
  %v359 = vld [vmem:[%s5 + $0x64] sm:$0xf]
  %v360 = vld [vmem:[%s5 + $0x68] sm:$0xf]
  %v361 = vld [vmem:[%s5 + $0x6c] sm:$0xf]
  %v362 = vld [vmem:[%s5 + $0x70] sm:$0xf]
  %v363 = vld [vmem:[%s5 + $0x74] sm:$0xf]
  %v364 = vld [vmem:[%s5 + $0x78] sm:$0xf]
  %v365 = vld [vmem:[%s5 + $0x7c] sm:$0xf]
  %v367 = vperm.slane %v29, 0
  %v401 = vunpack.c.l.b16 %v334
  %v402 = vunpack.c.l.b16 %v335
  %v403 = vunpack.c.l.b16 %v336
  %v404 = vunpack.c.l.b16 %v337
  %v405 = vunpack.c.l.b16 %v338
  %v406 = vunpack.c.l.b16 %v339
  %v407 = vunpack.c.l.b16 %v340
  %v408 = vunpack.c.l.b16 %v341
  %v409 = vunpack.c.l.b16 %v342
  %v410 = vunpack.c.l.b16 %v343
  %v411 = vunpack.c.l.b16 %v344
  %v412 = vunpack.c.l.b16 %v345
  %v413 = vunpack.c.l.b16 %v346
  %v414 = vunpack.c.l.b16 %v347
  %v415 = vunpack.c.l.b16 %v348
  %v416 = vunpack.c.l.b16 %v349
  %v417 = vunpack.c.l.b16 %v350
  %v418 = vunpack.c.l.b16 %v351
  %v419 = vunpack.c.l.b16 %v352
  %v420 = vunpack.c.l.b16 %v353
  %v421 = vunpack.c.l.b16 %v354
  %v422 = vunpack.c.l.b16 %v355
  %v423 = vunpack.c.l.b16 %v356
  %v424 = vunpack.c.l.b16 %v357
  %v425 = vunpack.c.l.b16 %v358
  %v426 = vunpack.c.l.b16 %v359
  %v427 = vunpack.c.l.b16 %v360
  %v428 = vunpack.c.l.b16 %v361
  %v429 = vunpack.c.l.b16 %v362
  %v430 = vunpack.c.l.b16 %v363
  %v431 = vunpack.c.l.b16 %v364
  %v432 = vunpack.c.l.b16 %v365
  %v433 = vpack.c.b16 %v402, %v401
  %v434 = vpack.c.b16 %v404, %v403
  %v435 = vpack.c.b16 %v406, %v405
  %v436 = vpack.c.b16 %v408, %v407
  %v437 = vpack.c.b16 %v410, %v409
  %v438 = vpack.c.b16 %v412, %v411
  %v439 = vpack.c.b16 %v414, %v413
  %v440 = vpack.c.b16 %v416, %v415
  %v441 = vpack.c.b16 %v418, %v417
  %v442 = vpack.c.b16 %v420, %v419
  %v443 = vpack.c.b16 %v422, %v421
  %v444 = vpack.c.b16 %v424, %v423
  %v445 = vpack.c.b16 %v426, %v425
  %v446 = vpack.c.b16 %v428, %v427
  %v447 = vpack.c.b16 %v430, %v429
  %v448 = vpack.c.b16 %v432, %v431
  %465 = vmatpush.bf16.msra.mxu0 %v440
  %466 = vmatpush.bf16.msra.mxu0 %v439
  %467 = vmatpush.bf16.msra.mxu0 %v438
  %468 = vmatpush.bf16.msra.mxu0 %v437
  %469 = vmatpush.bf16.msra.mxu0 %v436
  %470 = vmatpush.bf16.msra.mxu0 %v435
  %471 = vmatpush.bf16.msra.mxu0 %v434
  %472 = vmatpush.bf16.msra.mxu0 %v433
  %473 = vmatmul.bf16.gmra.mxu0 %v332
  %v474 = vpop.f32.mrf.mxu0
  %v475 = vadd.f32 %v367, %v474
  %v476 = vpop.f32.mrf.mxu0
  %477 = vdwg.mxu0
  %478 = vmatpush.bf16.msra.mxu0 %v448
  %479 = vmatpush.bf16.msra.mxu0 %v447
  %480 = vmatpush.bf16.msra.mxu0 %v446
  %481 = vmatpush.bf16.msra.mxu0 %v445
  %482 = vmatpush.bf16.msra.mxu0 %v444
  %483 = vmatpush.bf16.msra.mxu0 %v443
  %484 = vmatpush.bf16.msra.mxu0 %v442
  %485 = vmatpush.bf16.msra.mxu0 %v441
  %486 = vmatmul.bf16.gmra.mxu0 %v333
  %v487 = vpop.f32.mrf.mxu0
  %v488 = vadd.f32 %v475, %v487
  %v489 = vpop.f32.mrf.mxu0
  %490 = vdwg.mxu0
  %491 = vst [vmem:[%s7] sm:$0xff] %v488
  // Predicated region
  $region30: #{nn_forward.1} parent=0 // pred_check
    _
  $region31: #{nn_forward.1} parent=0 // pred_check_branch
    %493 = sbr.rel (0) target = $region33
  $region32: #{nn_forward.1} parent=0 // pred_region
    _
  $region33: #{nn_forward.1} parent=0 // pred_fallthru
    _
  // Predicated region
  $region34: #{nn_forward.1} parent=0 // pred_check
    _
  $region35: #{nn_forward.1} parent=0 // pred_check_branch
    %495 = sbr.rel (0) target = $region37
  $region36: #{nn_forward.1} parent=0 // pred_region
    _
  $region37: #{nn_forward.1} parent=0 // pred_fallthru
    _

</llo_original>
